<compile_context>
chip_gen: v7x
topology: tpu7x:2x2x1
jax: 0.10.0
libtpu: 0.0.40
codegen_flags: <defaults>
</compile_context>

<pallas_src>
import functools
import warnings

import jax
import jax.numpy as jnp
from jax.experimental import pallas as pl
from jax.experimental.pallas import tpu as pltpu


def _control_kernel(zero_idx_ref, x_ref, ctrl_ref, c2_ref, out_ref, *,
                    normalize, compute_f32):
    """Apply the control vector to one (TS, H) sequence tile of one batch row.

    zero_idx_ref : SMEM (B,) int32  -- index of last position_id == 0 per row (prefetch)
    x_ref        : VMEM (TS, H)     -- block output tile (batch dim squeezed)
    ctrl_ref     : VMEM (1, H)      -- coeff * control direction
    c2_ref       : SMEM (1,) f32    -- ||ctrl||^2, hoisted out of the kernel
    out_ref      : VMEM (TS, H)     -- aliased with the hidden input
    """
    b = pl.program_id(0)
    s = pl.program_id(1)

    x = x_ref[...]
    ctrl = ctrl_ref[...]
    if compute_f32:
        x = x.astype(jnp.float32)
        ctrl = ctrl.astype(jnp.float32)

    ts = x.shape[0]
    zi = zero_idx_ref[b]                                           # SMEM scalar read
    col = s * ts + jax.lax.broadcasted_iota(jnp.int32, (ts, 1), 0)  # global seq index
    mask = col >= zi                                               # (TS, 1) bool

    # default operator: h + control where mask (select, no mask-multiply)
    mod = jnp.where(mask, x + ctrl, x)                             # (TS, H)

    if normalize:
        # reductions accumulate in f32 even on the bf16-native path
        xf = x.astype(jnp.float32)
        cf = ctrl.astype(jnp.float32)
        x2 = jnp.sum(xf * xf, axis=-1, keepdims=True)              # (TS, 1) = ||x||^2
        xc = jnp.sum(xf * cf, axis=-1, keepdims=True)              # (TS, 1) = <x, ctrl>
        c2 = c2_ref[0]                                             # ||ctrl||^2 (hoisted)
        # ||mod||^2 = ||x||^2 + mask * (2 <x,ctrl> + ||ctrl||^2)  -- no mod*mod pass
        post = jnp.where(mask, x2 + 2.0 * xc + c2, x2)
        post = jnp.maximum(post, 1e-30)   # cancellation guard: never rsqrt(<=0)
        scale = jnp.sqrt(x2) * jax.lax.rsqrt(post)                 # norm_pre / norm_post
        mod = mod * scale.astype(mod.dtype)

    out_ref[...] = mod.astype(out_ref.dtype)


def _largest_divisor_tile(s_len, sub, max_tile):
    """Largest divisor of s_len that is a multiple of `sub` and <= max_tile (or None)."""
    best = None
    d = sub
    limit = min(max_tile, s_len)
    while d <= limit:
        if s_len % d == 0:
            best = d
        d += sub
    return best


@functools.partial(jax.jit, static_argnames=("normalize", "seq_tile"),
                   donate_argnums=(0,))
def control_module_forward(hidden, control, position_ids=None, *,
                           normalize=True, seq_tile=None):
    """JAX/Pallas equivalent of ControlModule.forward post-block logic.

    hidden       : (B, S, H) block output (donated: updated in place)
    control      : (H,) control vector (already scaled by coeff)
    position_ids : (P, S) int32 with P == B or P == 1, or None (mask == 1.0)
    """
    B, S, H = hidden.shape
    itemsize = jnp.dtype(hidden.dtype).itemsize
    # bf16/fp16: keep the add/where/scale path in the native dtype (reductions in f32)
    compute_f32 = itemsize >= 4
    sub = 16 if itemsize == 2 else (32 if itemsize == 1 else 8)

    # --- per-chip VMEM budget: v5e/v6e (128 MiB) -> 64 MiB scoped, v7x (64 MiB) -> 48 MiB
    try:
        vmem_cap = int(pltpu.get_tpu_info().vmem_capacity_bytes)
    except Exception:
        vmem_cap = 128 << 20
    vmem_limit = int(min(64 << 20, max(32 << 20, (vmem_cap * 3) // 4)))

    # Per-element VMEM cost: 2x-in + 2x-out double buffers + compute temporaries
    # (f32 temporaries when upcasting; native-width temps + reduction headroom otherwise).
    bytes_per_elem = 4 * itemsize + (8 if compute_f32 else 2 * itemsize + 4)
    block_elems = max(1, ((vmem_limit * 3) // 4) // bytes_per_elem)

    # --- sequence tile: never fall back to a full-sequence block that blows VMEM ---
    if seq_tile is None:
        target = max(sub, block_elems // max(H, 1))
        if B < 2 and S > sub:
            # keep >= ~4 sequence steps so both v7x TensorCores get work
            target = min(target, max(sub, -(-S // 4)))
        if target >= S:
            seq_tile = S
        else:
            seq_tile = _largest_divisor_tile(S, sub, target)
            if seq_tile is None:
                # no clean divisor: ragged last block, Pallas masks the writeback
                seq_tile = max(sub, (target // sub) * sub)
    else:
        seq_tile = int(min(seq_tile, S))
        if seq_tile < S:
            seq_tile = max(sub, (seq_tile // sub) * sub)
    grid = (B, pl.cdiv(S, seq_tile))

    # --- glue: per-row "last zero position" index (matches the torch code) ---
    if position_ids is None:
        zero_idx = jnp.zeros((B,), jnp.int32)      # col >= 0 everywhere  <=>  mask = 1.0
    else:
        pos = position_ids
        if pos.shape[0] != B:
            pos = jnp.tile(pos, (B, 1))
        zero_idx = jnp.argmax(
            jnp.cumsum((pos == 0).astype(jnp.int32), axis=1), axis=1
        ).astype(jnp.int32)                        # (B,)

    ctrl = control.reshape(1, H).astype(hidden.dtype)
    c2 = jnp.sum(ctrl.astype(jnp.float32) ** 2).reshape(1)   # ||ctrl||^2, hoisted

    cost = pl.CostEstimate(
        flops=(10 if normalize else 2) * B * S * H,
        transcendentals=(2 * B * S) if normalize else 0,
        bytes_accessed=2 * B * S * H * itemsize,
    )

    kernel = functools.partial(_control_kernel, normalize=normalize,
                               compute_f32=compute_f32)
    return pl.pallas_call(
        kernel,
        out_shape=jax.ShapeDtypeStruct((B, S, H), hidden.dtype),
        grid_spec=pltpu.PrefetchScalarGridSpec(
            num_scalar_prefetch=1,                 # zero_idx -> SMEM
            grid=grid,
            in_specs=[
                # batch dim squeezed out of the kernel ref
                pl.BlockSpec((None, seq_tile, H), lambda b, s, zi: (b, s, 0)),
                pl.BlockSpec((1, H), lambda b, s, zi: (0, 0)),
                pl.BlockSpec(memory_space=pltpu.MemorySpace.SMEM),   # ||ctrl||^2 scalar
            ],
            out_specs=pl.BlockSpec((None, seq_tile, H), lambda b, s, zi: (b, s, 0)),
        ),
        # hidden (input index 1, after the scalar-prefetch operand) aliases the output;
        # combined with donate_argnums at the jit boundary this is a true in-place update.
        input_output_aliases={1: 0},
        compiler_params=pltpu.CompilerParams(
            dimension_semantics=("parallel", "parallel"),
            vmem_limit_bytes=vmem_limit,
        ),
        cost_estimate=cost,
    )(zero_idx, hidden, ctrl, c2)


def _reference(hidden, control, position_ids=None, *, normalize=True):
    """Pure-JAX reference mirroring the PyTorch ControlModule.forward (f32 math)."""
    B, S, H = hidden.shape
    x = hidden.astype(jnp.float32)
    c = control.astype(jnp.float32).reshape(1, 1, H)
    if position_ids is None:
        mask = jnp.ones((B, S, 1), jnp.float32)
    else:
        pos = position_ids
        if pos.shape[0] != B:
            pos = jnp.tile(pos, (B, 1))
        zero_idx = jnp.argmax(jnp.cumsum((pos == 0).astype(jnp.int32), axis=1), axis=1)
        col = jnp.arange(S)[None, :]
        mask = (col >= zero_idx[:, None]).astype(jnp.float32)[..., None]   # (B,S,1)
    norm_pre = jnp.linalg.norm(x, axis=-1, keepdims=True)
    mod = x + c * mask
    if normalize:
        norm_post = jnp.linalg.norm(mod, axis=-1, keepdims=True)
        mod = mod / norm_post * norm_pre
    return mod.astype(hidden.dtype)


def _check(hidden, control, position_ids, *, normalize, seq_tile=None, tol=1e-4):
    ref = _reference(hidden, control, position_ids, normalize=normalize)
    # `hidden + 0` gives a fresh buffer so the donation inside the jitted wrapper never
    # invalidates a caller-held array (hidden is reused across tests below).
    out = control_module_forward(hidden + 0, control, position_ids,
                                 normalize=normalize, seq_tile=seq_tile)
    out = jax.block_until_ready(out)
    assert out.shape == hidden.shape
    assert jnp.allclose(out.astype(jnp.float32), ref.astype(jnp.float32),
                        atol=tol, rtol=tol), "mismatch vs reference"


if __name__ == "__main__":
    warnings.filterwarnings("ignore", message="Some donated buffers were not usable")

    key = jax.random.PRNGKey(0)
    k1, k2, k3, k4 = jax.random.split(key, 4)

    coeff = 0.5

    # --- test 1: small single-tile case (B=2, S=8, H=128), normalize=True ---
    B, S, H = 2, 8, 128
    hidden = jax.random.normal(k1, (B, S, H), dtype=jnp.float32)
    control = coeff * jax.random.normal(k2, (H,), dtype=jnp.float32)
    position_ids = jnp.array(
        [[0, 1, 2, 3, 4, 5, 6, 7],
         [0, 0, 0, 0, 1, 2, 3, 4]], dtype=jnp.int32)
    _check(hidden, control, position_ids, normalize=True)

    # --- test 2: multi-tile sequence (B=2, S=32, H=256, TS=8), position_ids (1,S) ---
    B, S, H = 2, 32, 256
    hidden2 = jax.random.normal(k3, (B, S, H), dtype=jnp.float32)
    control2 = coeff * jax.random.normal(k4, (H,), dtype=jnp.float32)
    pos2 = jnp.concatenate(
        [jnp.zeros((1, 5), jnp.int32), jnp.arange(1, S - 4, dtype=jnp.int32)[None, :]],
        axis=1)                                   # (1, S): broadcast-to-batch path
    _check(hidden2, control2, pos2, normalize=True, seq_tile=8)

    # --- test 3: normalize=False, no position_ids (mask == 1.0 everywhere) ---
    _check(hidden2, control2, None, normalize=False, seq_tile=16)

    # --- test 4: B=1 with S not a multiple of the tile (ragged last block, auto tile) ---
    hidden3 = jax.random.normal(k1, (1, 20, 128), dtype=jnp.float32)
    pos3 = jnp.concatenate(
        [jnp.zeros((1, 3), jnp.int32), jnp.arange(1, 18, dtype=jnp.int32)[None, :]],
        axis=1)                                   # (1, 20)
    _check(hidden3, control, pos3, normalize=True)

    # --- test 5: bf16 hidden (native bf16 math path, f32 reductions) ---
    hidden_bf = hidden2.astype(jnp.bfloat16)
    control_bf = control2.astype(jnp.bfloat16)
    _check(hidden_bf, control_bf, pos2, normalize=True, seq_tile=16, tol=6e-2)

    print("KERNEL_OK")
</pallas_src>

<mosaic_0001>
module attributes {stable_mosaic.version = 11 : i64} {
  func.func @_control_kernel(%arg0: i32, %arg1: i32, %arg2: memref<2xi32, #tpu.memory_space<smem>>, %arg3: memref<1x8x128xf32, #tpu.memory_space<vmem>>, %arg4: memref<1x128xf32, #tpu.memory_space<vmem>>, %arg5: memref<1xf32, #tpu.memory_space<smem>>, %arg6: memref<1x8x128xf32, #tpu.memory_space<vmem>>) attributes {dimension_semantics = [#tpu.dimension_semantics<parallel>, #tpu.dimension_semantics<parallel>], iteration_bounds = array<i64: 2, 1>, scalar_prefetch = 1 : i64, scratch_operands = 0 : i64, tpu.core_type = #tpu.core_type<tc>, window_params = [{transform_indices = @transform_0, window_bounds = array<i64: 1, 8, 128>}, {pipeline_mode = #tpu.pipeline_mode<synchronous>, transform_indices = @transform_1, window_bounds = array<i64: 1, 128>}, {transform_indices = @transform_2, window_bounds = array<i64: 1>}, {transform_indices = @transform_3, window_bounds = array<i64: 1, 8, 128>}]} {
    %c0 = arith.constant 0 : index
    %c0_0 = arith.constant 0 : index
    %c0_1 = arith.constant 0 : index
    %0 = vector.load %arg3[%c0, %c0_0, %c0_1] : memref<1x8x128xf32, #tpu.memory_space<vmem>>, vector<1x8x128xf32>
    %1 = vector.shape_cast %0 : vector<1x8x128xf32> to vector<8x128xf32>
    %c0_2 = arith.constant 0 : index
    %c0_3 = arith.constant 0 : index
    %2 = vector.load %arg4[%c0_2, %c0_3] : memref<1x128xf32, #tpu.memory_space<vmem>>, vector<1x128xf32>
    %3 = arith.index_cast %arg0 : i32 to index
    %4 = memref.load %arg2[%3] : memref<2xi32, #tpu.memory_space<smem>>
    %c8_i32 = arith.constant 8 : i32
    %5 = arith.muli %arg1, %c8_i32 : i32
    %6 = tpu.iota {dimensions = array<i32: 0>} : vector<8x1xi32>
    %7 = vector.broadcast %5 : i32 to vector<8x1xi32>
    %8 = arith.addi %7, %6 : vector<8x1xi32>
    %9 = vector.broadcast %4 : i32 to vector<8x1xi32>
    %10 = arith.cmpi sge, %8, %9 : vector<8x1xi32>
    %11 = vector.broadcast %2 : vector<1x128xf32> to vector<8x128xf32>
    %12 = arith.addf %1, %11 : vector<8x128xf32>
    %13 = vector.shape_cast %10 : vector<8x1xi1> to vector<8x1xi1>
    %14 = vector.broadcast %13 : vector<8x1xi1> to vector<8x128xi1>
    %15 = arith.select %14, %12, %1 : vector<8x128xi1>, vector<8x128xf32>
    %16 = arith.mulf %1, %1 : vector<8x128xf32>
    %cst = arith.constant dense<0.000000e+00> : vector<8xf32>
    %17 = vector.multi_reduction <add>, %16, %cst [1] : vector<8x128xf32> to vector<8xf32>
    %18 = vector.shape_cast %17 : vector<8xf32> to vector<8x1xf32>
    %19 = vector.broadcast %2 : vector<1x128xf32> to vector<8x128xf32>
    %20 = arith.mulf %1, %19 : vector<8x128xf32>
    %cst_4 = arith.constant dense<0.000000e+00> : vector<8xf32>
    %21 = vector.multi_reduction <add>, %20, %cst_4 [1] : vector<8x128xf32> to vector<8xf32>
    %22 = vector.shape_cast %21 : vector<8xf32> to vector<8x1xf32>
    %c0_5 = arith.constant 0 : index
    %23 = memref.load %arg5[%c0_5] : memref<1xf32, #tpu.memory_space<smem>>
    %cst_6 = arith.constant 2.000000e+00 : f32
    %24 = vector.broadcast %cst_6 : f32 to vector<8x1xf32>
    %25 = arith.mulf %24, %22 : vector<8x1xf32>
    %26 = arith.addf %18, %25 : vector<8x1xf32>
    %27 = vector.broadcast %23 : f32 to vector<8x1xf32>
    %28 = arith.addf %26, %27 : vector<8x1xf32>
    %29 = arith.select %10, %28, %18 : vector<8x1xi1>, vector<8x1xf32>
    %cst_7 = arith.constant 1.000000e-30 : f32
    %30 = vector.broadcast %cst_7 : f32 to vector<8x1xf32>
    %31 = arith.maximumf %29, %30 : vector<8x1xf32>
    %32 = math.sqrt %18 : vector<8x1xf32>
    %33 = math.rsqrt %31 : vector<8x1xf32>
    %34 = arith.mulf %32, %33 : vector<8x1xf32>
    %35 = vector.broadcast %34 : vector<8x1xf32> to vector<8x128xf32>
    %36 = arith.mulf %15, %35 : vector<8x128xf32>
    %c0_8 = arith.constant 0 : index
    %c0_9 = arith.constant 0 : index
    %c0_10 = arith.constant 0 : index
    %37 = vector.load %arg6[%c0_8, %c0_9, %c0_10] : memref<1x8x128xf32, #tpu.memory_space<vmem>>, vector<1x8x128xf32>
    %38 = vector.shape_cast %37 : vector<1x8x128xf32> to vector<8x128xf32>
    %39 = vector.shape_cast %36 : vector<8x128xf32> to vector<1x8x128xf32>
    tpu.vector_store %arg6[%c0_8, %c0_9, %c0_10], %39 {strides = array<i32>} : memref<1x8x128xf32, #tpu.memory_space<vmem>>, vector<1x8x128xf32>,
    return
  }
  func.func @transform_0(%arg0: i32, %arg1: i32, %arg2: memref<2xi32, #tpu.memory_space<smem>>) -> (i32, i32, i32) {
    %c0_i32 = arith.constant 0 : i32
    %c0_i32_0 = arith.constant 0 : i32
    return %arg0, %arg1, %c0_i32 : i32, i32, i32
  }
  func.func @transform_1(%arg0: i32, %arg1: i32, %arg2: memref<2xi32, #tpu.memory_space<smem>>) -> (i32, i32) {
    %c0_i32 = arith.constant 0 : i32
    %c0_i32_0 = arith.constant 0 : i32
    %c0_i32_1 = arith.constant 0 : i32
    return %c0_i32, %c0_i32_0 : i32, i32
  }
  func.func @transform_2(%arg0: i32, %arg1: i32, %arg2: memref<2xi32, #tpu.memory_space<smem>>) -> i32 {
    %c0_i32 = arith.constant 0 : i32
    %c0_i32_0 = arith.constant 0 : i32
    return %c0_i32 : i32
  }
  func.func @transform_3(%arg0: i32, %arg1: i32, %arg2: memref<2xi32, #tpu.memory_space<smem>>) -> (i32, i32, i32) {
    %c0_i32 = arith.constant 0 : i32
    %c0_i32_0 = arith.constant 0 : i32
    return %arg0, %arg1, %c0_i32 : i32, i32, i32
  }
}

</mosaic_0001>

<llo_original>
// kernel: control_module_forward.1
$region0: #{control_module_forward.1}
  #allocation0 [shape = 'u32[]', space=smem, size = 0x4, offset = 0x4, fixed_abs, tag = 'smem constant byte address 0x4 - core index']
  #allocation1 [shape = 'u32[144,128]{1,0:T(1,128)}', space=vmem, size = 0x12000, scoped, tag = 'internal scratch']
  #allocation2 [shape = 's32[1]{0}', space=sflag, size = 0x4, scoped, tag = 'scoped memory for control_module_forward.1']
  #allocation3 [shape = 'u8[512]{0}', space=smem, size = 0x200, scoped, tag = 'prefetched SMEM operand 0']
  #allocation4 [shape = 'f32[1]{0:T(128)S(6)}', space=smem, size = 0x200, scoped, tag = 'scoped memory for control_module_forward.1']
  %s0 = inlined_call_operand.hbm [shape: s32[2], index: 0, kind: input, shape index: {}]
  %s1 = inlined_call_operand.hbm [shape: f32[2,8,128], index: 1, kind: input, shape index: {}, may-alias: {1,4}]
  %s2 = inlined_call_operand.hbm [shape: f32[1,128], index: 2, kind: input, shape index: {}]
  %s3 = inlined_call_operand.<no memory space> [shape: f32[1], index: 3, kind: input, shape index: {}]
  %s4 = inlined_call_operand.hbm [shape: f32[2,8,128], index: 4, kind: output, shape index: {}, may-alias: {1,4}]
  %s5 = sld [smem:[#allocation0]]
  $region53: #{control_module_forward.1} parent=0
    _
  %s7 = ssub.s32 1, %s5
  %s8 = scalar_select 0, %s7, %s5
  %10 = dma.hbm_to_smem %s0, 16, [#allocation3], [#allocation2]
  %11 = sst [smem:[#allocation4]] %s3
  %12 = dma.done [#allocation2], 16
  %13 = sfence
  $region1: #{control_module_forward.1} parent=0
    #allocation5 [shape = 'u8[8192]{0}', space=vmem, size = 0x2000, scoped, tag = 'input window, operand 1']
    #allocation6 [shape = 's32[2]{0}', space=sflag, size = 0x8, scoped, tag = 'scoped memory for control_module_forward.1']
    #allocation7 [shape = 's32[2]{0}', space=sflag, size = 0x8, scoped, tag = 'scoped memory for control_module_forward.1']
    #allocation8 [shape = 'u8[512]{0}', space=vmem, size = 0x400, scoped, tag = 'input window, operand 2, single buffered']
    #allocation9 [shape = 's32[1]{0}', space=sflag, size = 0x4, scoped, tag = 'scoped memory for control_module_forward.1']
    #allocation10 [shape = 'u8[8192]{0}', space=vmem, size = 0x2000, scoped, tag = 'output window, operand 0']
    %14 = vsyncpa [#allocation6], 0
    %s15 = scalar_lea.sflag [#allocation6], 1
    %16 = vsyncpa %s15, 0
    %17 = vsyncpa [#allocation9], 0
    %18 = vsyncpa [#allocation7], 0
    %s19 = scalar_lea.sflag [#allocation7], 1
    %20 = vsyncpa %s19, 0
    loop: start=0, step=1, limit=4
    $region2: #{control_module_forward.1} parent=1 // loop_pre_header
      _
    $region3: #{control_module_forward.1} parent=1 // loop_header
      %s22 = sphi 0, %s26
      %p23 = scmp.ge.s32.totalorder %s22, 4
      %s29 = sphi 0, %s41
      %s30 = sphi 0, %s37
      %s31 = sphi 0, %s29
      %s32 = sphi 0, %s30
      %s33 = sphi 0, %s31
      %s34 = sphi 0, %s32
      %s46 = sphi 0, %s48
      %s49 = sphi 0, %s46
      %s50 = sphi 0, %s49
      %s66 = sphi 0, %s50
      %s70 = sphi 0, %s70
      %s72 = sphi 0, %s70
      %s73 = sphi 0, %s72
      %s87 = sphi 0, %s73
      %s91 = sphi 0, %s91
      %s93 = sphi 0, %s91
      %s94 = sphi 0, %s93
      %s108 = sphi 0, %s94
      %s116 = sphi 0, %s118
      %s119 = sphi 0, %s116
      %s120 = sphi 0, %s119
      %s136 = sphi 0, %s120
    $region4: #{control_module_forward.1} parent=1 // loop_header_branch
      %25 = sbr.rel (%p23) target = $region8
    $region5: #{control_module_forward.1} parent=1 // loop_body
      %s27 = ssub.s32 %s22, 1
      %s28 = ssub.s32 %s22, 2
      %s35 = sadd.s32 1, %s30
      %p36 = scmp.ge.s32.totalorder %s35, 1
      %s37 = scalar_select %p36, 0, %s35
      %s38 = sadd.s32 1, %s29
      %s39 = scalar_select %p36, %s38, %s29
      %p40 = scmp.ge.s32.totalorder %s39, 2
      %s41 = scalar_select %p40, 0, %s39
      %s42 = ssub.s32 %s29, %s41
      %s43 = ssub.s32 %s30, %s37
      %s44 = sor.u32 %s42, %s43
      %p45 = scmp.eq.s32.totalorder %s44, 0
      %s47 = sadd.s32 %s46, 1
      %s48 = scalar_select %p45, %s46, %s47
      %p51 = pneg %p45
      %p52 = scmp.eq.s32.totalorder %s22, 1
      %p53 = por %p51, %p52
      %p54 = scmp.ne.s32.totalorder %s46, %s49
      %p55 = scmp.eq.s32.totalorder %s22, 0
      %p56 = por %p54, %p55
      %p57 = scmp.ne.s32.totalorder %s46, %s49
      %p58 = scmp.eq.s32.totalorder %s27, 1
      %p59 = por %p57, %p58
      %p60 = scmp.ne.s32.totalorder %s49, %s50
      %p61 = scmp.eq.s32.totalorder %s27, 0
      %p62 = por %p60, %p61
      %p63 = scmp.ne.s32.totalorder %s49, %s50
      %p64 = scmp.eq.s32.totalorder %s28, 1
      %p65 = por %p63, %p64
      %p67 = scmp.ne.s32.totalorder %s50, %s66
      %p68 = scmp.eq.s32.totalorder %s28, 0
      %p69 = por %p67, %p68
      %s71 = sadd.s32 %s70, 1
      %p74 = scmp.eq.s32.totalorder %s22, 1
      %p75 = scmp.ne.s32.totalorder %s70, %s72
      %p76 = scmp.eq.s32.totalorder %s22, 0
      %p77 = por %p75, %p76
      %p78 = scmp.ne.s32.totalorder %s70, %s72
      %p79 = scmp.eq.s32.totalorder %s27, 1
      %p80 = por %p78, %p79
      %p81 = scmp.ne.s32.totalorder %s72, %s73
      %p82 = scmp.eq.s32.totalorder %s27, 0
      %p83 = por %p81, %p82
      %p84 = scmp.ne.s32.totalorder %s72, %s73
      %p85 = scmp.eq.s32.totalorder %s28, 1
      %p86 = por %p84, %p85
      %p88 = scmp.ne.s32.totalorder %s73, %s87
      %p89 = scmp.eq.s32.totalorder %s28, 0
      %p90 = por %p88, %p89
      %s92 = sadd.s32 %s91, 1
      %p95 = scmp.eq.s32.totalorder %s22, 1
      %p96 = scmp.ne.s32.totalorder %s91, %s93
      %p97 = scmp.eq.s32.totalorder %s22, 0
      %p98 = por %p96, %p97
      %p99 = scmp.ne.s32.totalorder %s91, %s93
      %p100 = scmp.eq.s32.totalorder %s27, 1
      %p101 = por %p99, %p100
      %p102 = scmp.ne.s32.totalorder %s93, %s94
      %p103 = scmp.eq.s32.totalorder %s27, 0
      %p104 = por %p102, %p103
      %p105 = scmp.ne.s32.totalorder %s93, %s94
      %p106 = scmp.eq.s32.totalorder %s28, 1
      %p107 = por %p105, %p106
      %p109 = scmp.ne.s32.totalorder %s94, %s108
      %p110 = scmp.eq.s32.totalorder %s28, 0
      %p111 = por %p109, %p110
      %s112 = ssub.s32 %s29, %s41
      %s113 = ssub.s32 %s30, %s37
      %s114 = sor.u32 %s112, %s113
      %p115 = scmp.eq.s32.totalorder %s114, 0
      %s117 = sadd.s32 %s116, 1
      %s118 = scalar_select %p115, %s116, %s117
      %p121 = pneg %p115
      %p122 = scmp.eq.s32.totalorder %s22, 1
      %p123 = por %p121, %p122
      %p124 = scmp.ne.s32.totalorder %s116, %s119
      %p125 = scmp.eq.s32.totalorder %s22, 0
      %p126 = por %p124, %p125
      %p127 = scmp.ne.s32.totalorder %s116, %s119
      %p128 = scmp.eq.s32.totalorder %s27, 1
      %p129 = por %p127, %p128
      %p130 = scmp.ne.s32.totalorder %s119, %s120
      %p131 = scmp.eq.s32.totalorder %s27, 0
      %p132 = por %p130, %p131
      %p133 = scmp.ne.s32.totalorder %s119, %s120
      %p134 = scmp.eq.s32.totalorder %s28, 1
      %p135 = por %p133, %p134
      %p137 = scmp.ne.s32.totalorder %s120, %s136
      %p138 = scmp.eq.s32.totalorder %s28, 0
      %p139 = por %p137, %p138
      %p140 = scmp.le.s32.totalorder 1, %s22
      %p141 = scmp.lt.s32.totalorder %s22, 3
      %p142 = pnand %p140, %p141
      %p143 = pneg %p142
      // Predicated region
      $region9: #{control_module_forward.1} parent=5 // pred_check
        _
      $region10: #{control_module_forward.1} parent=5 // pred_check_branch
        %145 = sbr.rel (%p142) target = $region12
      $region11: #{control_module_forward.1} parent=5 // pred_region
        %s146 = ssub.s32 %s22, 1
        // Predicated region
        $region13: #{control_module_forward.1} parent=11 // pred_check
          %p147 = pneg %p83
        $region14: #{control_module_forward.1} parent=11 // pred_check_branch
          %149 = sbr.rel (%p147) target = $region16
        $region15: #{control_module_forward.1} parent=11 // pred_region
          %s151 = ssub.s32 16, 16
          %152 = vsyncadd [#allocation9], %s151
          %s154 = sshll.u32 [#allocation8], 4
          %s155 = int_to_ptr.vmem [resolvable:$true] %s154
          %157 = dma.hbm_to_vmem [thread:$0]  %s2, 16, %s155, [#allocation9]
        $region16: #{control_module_forward.1} parent=11 // pred_fallthru
          _
        // Predicated region
        $region17: #{control_module_forward.1} parent=11 // pred_check
          %p158 = pneg %p104
        $region18: #{control_module_forward.1} parent=11 // pred_check_branch
          %160 = sbr.rel (%p158) target = $region20
        $region19: #{control_module_forward.1} parent=11 // pred_region
          _
        $region20: #{control_module_forward.1} parent=11 // pred_fallthru
          _
      $region12: #{control_module_forward.1} parent=5 // pred_fallthru
        _
      %p161 = scmp.lt.s32.totalorder %s22, 2
      // Predicated region
      $region21: #{control_module_forward.1} parent=5 // pred_check
        %p162 = pneg %p161
      $region22: #{control_module_forward.1} parent=5 // pred_check_branch
        %164 = sbr.rel (%p162) target = $region24
      $region23: #{control_module_forward.1} parent=5 // pred_region
        // Predicated region
        $region25: #{control_module_forward.1} parent=23 // pred_check
          %p165 = pneg %p56
        $region26: #{control_module_forward.1} parent=23 // pred_check_branch
          %167 = sbr.rel (%p165) target = $region28
        $region27: #{control_module_forward.1} parent=23 // pred_region
          %s168 = sand.u32 %s46, 1
          %s169 = scalar_lea.sflag [#allocation6], %s168
          %s170 = sand.u32 %s46, 1
          %s171 = smul.addr %s170, 8
          %s172 = scalar_lea.vmem [#allocation5], %s171
          %s174 = ssub.s32 128, 128
          %175 = vsyncadd %s169, %s174
          %s176 = sadd.s32 %s30, %s29
          %s177 = smul.addr %s176, 128
          %s178 = scalar_lea.hbm %s1, %s177
          %s180 = sshll.u32 %s172, 4
          %s181 = int_to_ptr.vmem [resolvable:$true] %s180
          %183 = dma.hbm_to_vmem [thread:$0]  %s178, 128, %s181, %s169
        $region28: #{control_module_forward.1} parent=23 // pred_fallthru
          _
      $region24: #{control_module_forward.1} parent=5 // pred_fallthru
        _
      %p184 = scmp.le.s32.totalorder 1, %s22
      %p185 = scmp.lt.s32.totalorder %s22, 3
      %p186 = pnand %p184, %p185
      %p187 = pneg %p186
      // Predicated region
      $region29: #{control_module_forward.1} parent=5 // pred_check
        _
      $region30: #{control_module_forward.1} parent=5 // pred_check_branch
        %189 = sbr.rel (%p186) target = $region32
      $region31: #{control_module_forward.1} parent=5 // pred_region
        %s190 = ssub.s32 %s22, 1
        %s191 = sand.u32 %s49, 1
        %s192 = scalar_lea.sflag [#allocation6], %s191
        %s193 = sand.u32 %s49, 1
        %s194 = smul.addr %s193, 8
        %s195 = scalar_lea.vmem [#allocation5], %s194
        // Predicated region
        $region33: #{control_module_forward.1} parent=31 // pred_check
          %p196 = pneg %p62
        $region34: #{control_module_forward.1} parent=31 // pred_check_branch
          %198 = sbr.rel (%p196) target = $region36
        $region35: #{control_module_forward.1} parent=31 // pred_region
          %199 = dma.done %s192, 128
        $region36: #{control_module_forward.1} parent=31 // pred_fallthru
          _
        // Predicated region
        $region37: #{control_module_forward.1} parent=31 // pred_check
          %p200 = pneg %p83
        $region38: #{control_module_forward.1} parent=31 // pred_check_branch
          %202 = sbr.rel (%p200) target = $region40
        $region39: #{control_module_forward.1} parent=31 // pred_region
          %203 = dma.done [#allocation9], 16
        $region40: #{control_module_forward.1} parent=31 // pred_fallthru
          _
        %s204 = sand.u32 %s49, 1
        %s205 = scalar_lea.sflag [#allocation6], %s204
        %s206 = sand.u32 %s49, 1
        %s207 = smul.addr %s206, 8
        %s208 = scalar_lea.vmem [#allocation5], %s207
        %p209 = pneg %p62
        %p210 = pneg %p59
        %p211 = pneg %p83
        %p212 = pneg %p80
        %p213 = pneg %p104
        %p214 = pneg %p101
        %p215 = pneg %p132
        %p216 = pneg %p129
        %s217 = sand.u32 %s119, 1
        %s218 = scalar_lea.sflag [#allocation7], %s217
        %s219 = sand.u32 %s119, 1
        %s220 = smul.addr %s219, 8
        %s221 = scalar_lea.vmem [#allocation10], %s220
        %v222 = vld [vmem:[%s195] sm:$0xff]
        %v223 = vld [vmem:[#allocation8] sm:$0x1]
        %s224 = sld [smem:[#allocation3 + %s31]]
        %s225 = smul.u32 %s32, 8
        %v226 = vlaneseq
        %v227 = vshrl.u32 %v226, 7
        %v228 = vstv %s225
        %v229 = vadd.s32 %v228, %v227
        %v230 = vstv %s224
        %vm231 = vcmp.ge.s32.totalorder %v229, %v230
        %v233 = vlaneseq
        %v234 = vshrl.u32 %v233, 7
        %v235 = vsub.s32 0, %v234
        %v236 = vrot.slane %v223, %v235
        %v238 = vadd.f32 %v222, %v236
        %v239 = vsel %vm231, 1, 0
        %vm240 = vcmp.eq.s32.totalorder %v239, 1
        %v241 = vsel %vm240, %v238, %v222
        %v242 = vmul.f32 %v222, %v222
        %243 = vadd.xlane.f32.xlu0 %v242
        %v244 = vpop.xlane.xlu0 %243
        %v245 = vmul.f32 %v222, %v236
        %246 = vadd.xlane.f32.xlu0 %v245
        %v247 = vpop.xlane.xlu0 %246
        %s248 = sld [smem:[#allocation4]]
        %v249 = vmul.f32 %v247, 2.0
        %v250 = vadd.f32 %v244, %v249
        %v251 = vstv %s248
        %v252 = vadd.f32 %v250, %v251
        %v253 = vsel %vm231, %v252, %v244
        %v254 = vmax.f32 %v253, 1e-30
        %v255 = vrsqrt.pop %v244
        %v256 = vmul.f32 %v244, %v255
        %vm257 = vcmp.eq.f32.partialorder %v244, inf
        %v258 = vsel %vm257, %v244, %v256
        %vm259 = vcmp.eq.f32.partialorder %v244, 0.0
        %v260 = vand.u32 %v244, 2147483648
        %v261 = vsel %vm259, %v260, %v258
        %v262 = vrsqrt.pop %v254
        %v263 = vmul.f32 %v261, %v262
        %v264 = vmul.f32 %v241, %v263
        %265 = vst [vmem:[%s221] sm:$0xff] %v264
        %s266 = sand.u32 %s119, 1
        %s267 = scalar_lea.sflag [#allocation7], %s266
        %s268 = sand.u32 %s119, 1
        %s269 = smul.addr %s268, 8
        %s270 = scalar_lea.vmem [#allocation10], %s269
        // Predicated region
        $region41: #{control_module_forward.1} parent=31 // pred_check
          %p271 = pneg %p129
        $region42: #{control_module_forward.1} parent=31 // pred_check_branch
          %273 = sbr.rel (%p271) target = $region44
        $region43: #{control_module_forward.1} parent=31 // pred_region
          %s275 = ssub.s32 128, 128
          %276 = vsyncadd %s267, %s275
          %s277 = sadd.s32 %s32, %s31
          %s278 = smul.addr %s277, 128
          %s279 = scalar_lea.hbm %s4, %s278
          %s281 = sshll.u32 %s270, 4
          %s282 = int_to_ptr.vmem [resolvable:$true] %s281
          %284 = dma.vmem_to_hbm [thread:$0]  %s282, 128, %s279, %s267
        $region44: #{control_module_forward.1} parent=31 // pred_fallthru
          _
      $region32: #{control_module_forward.1} parent=5 // pred_fallthru
        _
      %p285 = scmp.le.s32.totalorder 2, %s22
      // Predicated region
      $region45: #{control_module_forward.1} parent=5 // pred_check
        %p286 = pneg %p285
      $region46: #{control_module_forward.1} parent=5 // pred_check_branch
        %288 = sbr.rel (%p286) target = $region48
      $region47: #{control_module_forward.1} parent=5 // pred_region
        %s289 = ssub.s32 %s22, 2
        // Predicated region
        $region49: #{control_module_forward.1} parent=47 // pred_check
          %p290 = pneg %p135
        $region50: #{control_module_forward.1} parent=47 // pred_check_branch
          %292 = sbr.rel (%p290) target = $region52
        $region51: #{control_module_forward.1} parent=47 // pred_region
          %s293 = sand.u32 %s120, 1
          %s294 = scalar_lea.sflag [#allocation7], %s293
          %s295 = sand.u32 %s120, 1
          %s296 = smul.addr %s295, 8
          %s297 = scalar_lea.vmem [#allocation10], %s296
          %298 = dma.done %s294, 128
        $region52: #{control_module_forward.1} parent=47 // pred_fallthru
          _
      $region48: #{control_module_forward.1} parent=5 // pred_fallthru
        _
    $region6: #{control_module_forward.1} parent=1 // loop_footer
      %s26 = sadd.s32 1, %s22
    $region7: #{control_module_forward.1} parent=1 // loop_footer_branch
      %21 = sbr.rel target = $region3
    $region8: #{control_module_forward.1} parent=1 // loop_exit
      _
    %299 = vsyncpa [#allocation6], 1
    %s300 = scalar_lea.sflag [#allocation6], 1
    %301 = vsyncpa %s300, 1
    %302 = vsyncpa [#allocation9], 1
    %303 = vsyncpa [#allocation7], 1
    %s304 = scalar_lea.sflag [#allocation7], 1
    %305 = vsyncpa %s304, 1

</llo_original>
